<compile_context>
chip_gen: v6e
topology: v6e:2x2x1
jax: 0.10.0
libtpu: 0.0.40
codegen_flags: <defaults>
</compile_context>

<pallas_src>
import jax
import jax.numpy as jnp
import numpy as np
from jax.experimental import pallas as pl
from jax.experimental.pallas import tpu as pltpu


def cp_l3_kernel(x_ref, w123_ref, wc_ref, bc_ref, out_ref):
    """CP_L3 forward for one batch tile: fused projections + Hadamard/skip + head."""
    x = x_ref[...]                                                        # (TM, D)

    # Single fused MXU matmul producing [U1(x) | U2(x) | U3(x)] in one pass.
    h = jnp.dot(x, w123_ref[...], preferred_element_type=jnp.float32)    # (TM, 3R)

    R = wc_ref.shape[1]
    h1 = h[:, 0 * R:1 * R]
    u2 = h[:, 1 * R:2 * R]
    u3 = h[:, 2 * R:3 * R]

    # Degree-3 CCP recurrence (VPU elementwise on the resident tile).
    h2 = u2 * h1 + h1                                                     # (TM, R)
    h3 = u3 * h2 + h2                                                     # (TM, R)

    # Head: out_features == 1, so the final Linear is a lane reduction
    # (VPU mul + XLU reduce) instead of a 1-column MXU matmul.
    y = jnp.sum(h3 * wc_ref[...], axis=-1, keepdims=True)                 # (TM, 1)
    out_ref[...] = y + bc_ref[0, 0]


def critic_cp_l3(x_nchw, w1, w2, w3, wc, bc):
    """x_nchw: (B, C, H, W) float32. Weights: w1/w2/w3 (D, R), wc (R, 1), bc (1, 1)."""
    B = x_nchw.shape[0]
    D = int(np.prod(x_nchw.shape[1:]))
    x = x_nchw.reshape(B, D).astype(jnp.float32)   # same flattening as torch .view(B, -1)
    R = w1.shape[1]

    # Fuse the three projection weights into one (D, 3R) matrix.
    # (In a real deployment do this once at parameter-load time, not per call.)
    w123 = jnp.concatenate([w1, w2, w3], axis=1).astype(jnp.float32)     # (D, 3R)
    wc_row = wc.reshape(1, R).astype(jnp.float32)                        # (1, R)
    bc_sc = bc.reshape(1, 1).astype(jnp.float32)                         # (1, 1) -> SMEM

    # Batch tiling: round the tile up to a full f32 sublane group (8), cap at 128.
    if B >= 128:
        TM = 128
    else:
        TM = ((B + 7) // 8) * 8
    B_pad = ((B + TM - 1) // TM) * TM
    if B_pad != B:
        x = jnp.pad(x, ((0, B_pad - B), (0, 0)))
    num_tiles = B_pad // TM

    out = pl.pallas_call(
        cp_l3_kernel,
        out_shape=jax.ShapeDtypeStruct((B_pad, 1), jnp.float32),
        grid_spec=pltpu.PrefetchScalarGridSpec(
            num_scalar_prefetch=0,
            grid=(num_tiles,),
            in_specs=[
                # x: one (TM, D) batch tile per grid step (double-buffered by Pallas).
                pl.BlockSpec((TM, D), lambda i: (i, 0)),
                # Fused projection weights: same block every step -> fetched once,
                # stays resident in VMEM across the whole grid.
                pl.BlockSpec((D, 3 * R), lambda i: (0, 0)),
                # Head weights as a single lane row, resident in VMEM.
                pl.BlockSpec((1, R), lambda i: (0, 0)),
                # Bias scalar via the scalar path (SMEM), no padded VMEM tile / DMA.
                pl.BlockSpec(memory_space=pltpu.MemorySpace.SMEM),
            ],
            out_specs=pl.BlockSpec((TM, 1), lambda i: (i, 0)),
        ),
        compiler_params=pltpu.CompilerParams(
            # Batch tiles are independent -> shard across TensorCores on v7x;
            # harmless (serial loop) on single-TC v5e/v6e.
            dimension_semantics=("parallel",),
        ),
    )(x, w123, wc_row, bc_sc)

    return out[:B]


def reference(x_nchw, w1, w2, w3, wc, bc):
    B = x_nchw.shape[0]
    z = x_nchw.reshape(B, -1).astype(jnp.float32)
    h1 = z @ w1
    h2 = (z @ w2) * h1 + h1
    h3 = (z @ w3) * h2 + h2
    return h3 @ wc + bc[0, 0]


if __name__ == "__main__":
    key = jax.random.PRNGKey(0)
    k_x, k1, k2, k3, kc, kb = jax.random.split(key, 6)

    # Small shapes consistent with the module: image input flattened to D, rank R.
    B, C, H, W = 2, 4, 16, 16
    D = C * H * W          # "input" argument of Critic_CP_L3
    R = 32                 # "rank" argument of Critic_CP_L3

    x = jax.random.normal(k_x, (B, C, H, W), dtype=jnp.float32)

    # Deterministic synthetic parameters (shapes match nn.Linear(D, R, bias=False).T etc.).
    scale_u = 1.0 / np.sqrt(D)
    scale_c = 1.0 / np.sqrt(R)
    w1 = jax.random.uniform(k1, (D, R), jnp.float32, -scale_u, scale_u)
    w2 = jax.random.uniform(k2, (D, R), jnp.float32, -scale_u, scale_u)
    w3 = jax.random.uniform(k3, (D, R), jnp.float32, -scale_u, scale_u)
    wc = jax.random.uniform(kc, (R, 1), jnp.float32, -scale_c, scale_c)
    bc = jax.random.uniform(kb, (1, 1), jnp.float32, -scale_c, scale_c)

    out = jax.block_until_ready(critic_cp_l3(x, w1, w2, w3, wc, bc))
    ref = jax.block_until_ready(reference(x, w1, w2, w3, wc, bc))

    assert out.shape == (B, 1), out.shape
    np.testing.assert_allclose(np.asarray(out), np.asarray(ref), rtol=1e-4, atol=1e-4)
    print("KERNEL_OK")
</pallas_src>

<mosaic_0001>
module attributes {stable_mosaic.version = 11 : i64} {
  func.func @cp_l3_kernel(%arg0: i32, %arg1: memref<8x1024xf32, #tpu.memory_space<vmem>>, %arg2: memref<1024x96xf32, #tpu.memory_space<vmem>>, %arg3: memref<1x32xf32, #tpu.memory_space<vmem>>, %arg4: memref<1x1xf32, #tpu.memory_space<smem>>, %arg5: memref<8x1xf32, #tpu.memory_space<vmem>>) attributes {dimension_semantics = [#tpu.dimension_semantics<parallel>], iteration_bounds = array<i64: 1>, scalar_prefetch = 0 : i64, scratch_operands = 0 : i64, tpu.core_type = #tpu.core_type<tc>, window_params = [{transform_indices = @transform_0, window_bounds = array<i64: 8, 1024>}, {pipeline_mode = #tpu.pipeline_mode<synchronous>, transform_indices = @transform_1, window_bounds = array<i64: 1024, 96>}, {pipeline_mode = #tpu.pipeline_mode<synchronous>, transform_indices = @transform_2, window_bounds = array<i64: 1, 32>}, {transform_indices = @transform_3, window_bounds = array<i64: 1, 1>}, {transform_indices = @transform_4, window_bounds = array<i64: 8, 1>}]} {
    %c0 = arith.constant 0 : index
    %c0_0 = arith.constant 0 : index
    %0 = vector.load %arg1[%c0, %c0_0] : memref<8x1024xf32, #tpu.memory_space<vmem>>, vector<8x1024xf32>
    %c0_1 = arith.constant 0 : index
    %c0_2 = arith.constant 0 : index
    %1 = vector.load %arg2[%c0_1, %c0_2] : memref<1024x96xf32, #tpu.memory_space<vmem>>, vector<1024x96xf32>
    %cst = arith.constant dense<0.000000e+00> : vector<8x96xf32>
    %2 = tpu.matmul %0, %1, %cst {dimension_numbers = #tpu.dot_dimension_numbers<[1], [0], [0], [1], [0, 0, 1, 1], [], []>} : vector<8x1024xf32>, vector<1024x96xf32>, vector<8x96xf32> -> vector<8x96xf32>
    %3 = vector.extract_strided_slice %2 {offsets = [0, 0], sizes = [8, 32], strides = [1, 1]} : vector<8x96xf32> to vector<8x32xf32>
    %4 = vector.extract_strided_slice %2 {offsets = [0, 32], sizes = [8, 32], strides = [1, 1]} : vector<8x96xf32> to vector<8x32xf32>
    %5 = vector.extract_strided_slice %2 {offsets = [0, 64], sizes = [8, 32], strides = [1, 1]} : vector<8x96xf32> to vector<8x32xf32>
    %6 = arith.mulf %4, %3 : vector<8x32xf32>
    %7 = arith.addf %6, %3 : vector<8x32xf32>
    %8 = arith.mulf %5, %7 : vector<8x32xf32>
    %9 = arith.addf %8, %7 : vector<8x32xf32>
    %c0_3 = arith.constant 0 : index
    %c0_4 = arith.constant 0 : index
    %10 = vector.load %arg3[%c0_3, %c0_4] : memref<1x32xf32, #tpu.memory_space<vmem>>, vector<1x32xf32>
    %11 = vector.broadcast %10 : vector<1x32xf32> to vector<8x32xf32>
    %12 = arith.mulf %9, %11 : vector<8x32xf32>
    %cst_5 = arith.constant dense<0.000000e+00> : vector<8xf32>
    %13 = vector.multi_reduction <add>, %12, %cst_5 [1] : vector<8x32xf32> to vector<8xf32>
    %14 = vector.shape_cast %13 : vector<8xf32> to vector<8x1xf32>
    %c0_6 = arith.constant 0 : index
    %c0_7 = arith.constant 0 : index
    %15 = memref.load %arg4[%c0_6, %c0_7] : memref<1x1xf32, #tpu.memory_space<smem>>
    %16 = vector.broadcast %15 : f32 to vector<8x1xf32>
    %17 = arith.addf %14, %16 : vector<8x1xf32>
    %c0_8 = arith.constant 0 : index
    %c0_9 = arith.constant 0 : index
    %18 = vector.load %arg5[%c0_8, %c0_9] : memref<8x1xf32, #tpu.memory_space<vmem>>, vector<8x1xf32>
    tpu.vector_store %arg5[%c0_8, %c0_9], %17 {strides = array<i32>} : memref<8x1xf32, #tpu.memory_space<vmem>>, vector<8x1xf32>,
    return
  }
  func.func @transform_0(%arg0: i32) -> (i32, i32) {
    %c0_i32 = arith.constant 0 : i32
    %c0_i32_0 = arith.constant 0 : i32
    return %arg0, %c0_i32 : i32, i32
  }
  func.func @transform_1(%arg0: i32) -> (i32, i32) {
    %c0_i32 = arith.constant 0 : i32
    %c0_i32_0 = arith.constant 0 : i32
    %c0_i32_1 = arith.constant 0 : i32
    return %c0_i32, %c0_i32_0 : i32, i32
  }
  func.func @transform_2(%arg0: i32) -> (i32, i32) {
    %c0_i32 = arith.constant 0 : i32
    %c0_i32_0 = arith.constant 0 : i32
    %c0_i32_1 = arith.constant 0 : i32
    return %c0_i32, %c0_i32_0 : i32, i32
  }
  func.func @transform_3(%arg0: i32) -> (i32, i32) {
    %c0_i32 = arith.constant 0 : i32
    %c0_i32_0 = arith.constant 0 : i32
    %c0_i32_1 = arith.constant 0 : i32
    return %c0_i32, %c0_i32_0 : i32, i32
  }
  func.func @transform_4(%arg0: i32) -> (i32, i32) {
    %c0_i32 = arith.constant 0 : i32
    %c0_i32_0 = arith.constant 0 : i32
    return %arg0, %c0_i32 : i32, i32
  }
}

</mosaic_0001>

<llo_original>
// kernel: tpu_custom_call.1
$region0: #{tpu_custom_call.1}
  #allocation0 [shape = 'u32[]', space=smem, size = 0x4, offset = 0x4, fixed_abs, tag = 'smem constant byte address 0x4 - core index']
  #allocation1 [shape = 'u32[144,128]{1,0:T(1,128)}', space=vmem, size = 0x12000, scoped, tag = 'internal scratch']
  #allocation2 [shape = 'f32[1,1]{1,0:T(1,128)S(6)}', space=smem, size = 0x200, scoped, tag = 'scoped memory for tpu_custom_call.1']
  %s0 = inlined_call_operand.vmem [shape: f32[8,1024], index: 0, kind: input, shape index: {}]
  %s1 = inlined_call_operand.vmem [shape: f32[1024,96], index: 1, kind: input, shape index: {}]
  %s2 = inlined_call_operand.vmem [shape: f32[1,32], index: 2, kind: input, shape index: {}]
  %s3 = inlined_call_operand.<no memory space> [shape: f32[1,1], index: 3, kind: input, shape index: {}]
  %s4 = inlined_call_operand.vmem [shape: f32[8,1], index: 4, kind: output, shape index: {}]
  %s5 = sld [smem:[#allocation0]]
  $region26: #{tpu_custom_call.1} parent=0
    _
  %s7 = ssub.s32 1, %s5
  %s8 = scalar_select 0, %s7, %s5
  %9 = sst [smem:[#allocation2]] %s3
  // Predicated region
  $region2: #{tpu_custom_call.1} parent=0 // pred_check
    _
  $region3: #{tpu_custom_call.1} parent=0 // pred_check_branch
    %11 = sbr.rel (0) target = $region5
  $region4: #{tpu_custom_call.1} parent=0 // pred_region
    _
  $region5: #{tpu_custom_call.1} parent=0 // pred_fallthru
    _
  // Predicated region
  $region6: #{tpu_custom_call.1} parent=0 // pred_check
    _
  $region7: #{tpu_custom_call.1} parent=0 // pred_check_branch
    %13 = sbr.rel (0) target = $region9
  $region8: #{tpu_custom_call.1} parent=0 // pred_region
    _
  $region9: #{tpu_custom_call.1} parent=0 // pred_fallthru
    _
  // Predicated region
  $region10: #{tpu_custom_call.1} parent=0 // pred_check
    _
  $region11: #{tpu_custom_call.1} parent=0 // pred_check_branch
    %15 = sbr.rel (0) target = $region13
  $region12: #{tpu_custom_call.1} parent=0 // pred_region
    _
  $region13: #{tpu_custom_call.1} parent=0 // pred_fallthru
    _
  // Predicated region
  $region14: #{tpu_custom_call.1} parent=0 // pred_check
    _
  $region15: #{tpu_custom_call.1} parent=0 // pred_check_branch
    %17 = sbr.rel (0) target = $region17
  $region16: #{tpu_custom_call.1} parent=0 // pred_region
    _
  $region17: #{tpu_custom_call.1} parent=0 // pred_fallthru
    _
  %v18 = vld [vmem:[%s0] sm:$0xff]
  %v19 = vld [vmem:[%s0 + $0x8] sm:$0xff]
  %v20 = vld [vmem:[%s0 + $0x10] sm:$0xff]
  %v21 = vld [vmem:[%s0 + $0x18] sm:$0xff]
  %v22 = vld [vmem:[%s0 + $0x20] sm:$0xff]
  %v23 = vld [vmem:[%s0 + $0x28] sm:$0xff]
  %v24 = vld [vmem:[%s0 + $0x30] sm:$0xff]
  %v25 = vld [vmem:[%s0 + $0x38] sm:$0xff]
  %v26 = vld [vmem:[%s1] sm:$0xff]
  %v27 = vld [vmem:[%s1 + $0x8] sm:$0xff]
  %v28 = vld [vmem:[%s1 + $0x10] sm:$0xff]
  %v29 = vld [vmem:[%s1 + $0x18] sm:$0xff]
  %v30 = vld [vmem:[%s1 + $0x20] sm:$0xff]
  %v31 = vld [vmem:[%s1 + $0x28] sm:$0xff]
  %v32 = vld [vmem:[%s1 + $0x30] sm:$0xff]
  %v33 = vld [vmem:[%s1 + $0x38] sm:$0xff]
  %v34 = vld [vmem:[%s1 + $0x40] sm:$0xff]
  %v35 = vld [vmem:[%s1 + $0x48] sm:$0xff]
  %v36 = vld [vmem:[%s1 + $0x50] sm:$0xff]
  %v37 = vld [vmem:[%s1 + $0x58] sm:$0xff]
  %v38 = vld [vmem:[%s1 + $0x60] sm:$0xff]
  %v39 = vld [vmem:[%s1 + $0x68] sm:$0xff]
  %v40 = vld [vmem:[%s1 + $0x70] sm:$0xff]
  %v41 = vld [vmem:[%s1 + $0x78] sm:$0xff]
  %v42 = vld [vmem:[%s1 + $0x80] sm:$0xff]
  %v43 = vld [vmem:[%s1 + $0x88] sm:$0xff]
  %v44 = vld [vmem:[%s1 + $0x90] sm:$0xff]
  %v45 = vld [vmem:[%s1 + $0x98] sm:$0xff]
  %v46 = vld [vmem:[%s1 + $0xa0] sm:$0xff]
  %v47 = vld [vmem:[%s1 + $0xa8] sm:$0xff]
  %v48 = vld [vmem:[%s1 + $0xb0] sm:$0xff]
  %v49 = vld [vmem:[%s1 + $0xb8] sm:$0xff]
  %v50 = vld [vmem:[%s1 + $0xc0] sm:$0xff]
  %v51 = vld [vmem:[%s1 + $0xc8] sm:$0xff]
  %v52 = vld [vmem:[%s1 + $0xd0] sm:$0xff]
  %v53 = vld [vmem:[%s1 + $0xd8] sm:$0xff]
  %v54 = vld [vmem:[%s1 + $0xe0] sm:$0xff]
  %v55 = vld [vmem:[%s1 + $0xe8] sm:$0xff]
  %v56 = vld [vmem:[%s1 + $0xf0] sm:$0xff]
  %v57 = vld [vmem:[%s1 + $0xf8] sm:$0xff]
  %v58 = vld [vmem:[%s1 + $0x100] sm:$0xff]
  %v59 = vld [vmem:[%s1 + $0x108] sm:$0xff]
  %v60 = vld [vmem:[%s1 + $0x110] sm:$0xff]
  %v61 = vld [vmem:[%s1 + $0x118] sm:$0xff]
  %v62 = vld [vmem:[%s1 + $0x120] sm:$0xff]
  %v63 = vld [vmem:[%s1 + $0x128] sm:$0xff]
  %v64 = vld [vmem:[%s1 + $0x130] sm:$0xff]
  %v65 = vld [vmem:[%s1 + $0x138] sm:$0xff]
  %v66 = vld [vmem:[%s1 + $0x140] sm:$0xff]
  %v67 = vld [vmem:[%s1 + $0x148] sm:$0xff]
  %v68 = vld [vmem:[%s1 + $0x150] sm:$0xff]
  %v69 = vld [vmem:[%s1 + $0x158] sm:$0xff]
  %v70 = vld [vmem:[%s1 + $0x160] sm:$0xff]
  %v71 = vld [vmem:[%s1 + $0x168] sm:$0xff]
  %v72 = vld [vmem:[%s1 + $0x170] sm:$0xff]
  %v73 = vld [vmem:[%s1 + $0x178] sm:$0xff]
  %v74 = vld [vmem:[%s1 + $0x180] sm:$0xff]
  %v75 = vld [vmem:[%s1 + $0x188] sm:$0xff]
  %v76 = vld [vmem:[%s1 + $0x190] sm:$0xff]
  %v77 = vld [vmem:[%s1 + $0x198] sm:$0xff]
  %v78 = vld [vmem:[%s1 + $0x1a0] sm:$0xff]
  %v79 = vld [vmem:[%s1 + $0x1a8] sm:$0xff]
  %v80 = vld [vmem:[%s1 + $0x1b0] sm:$0xff]
  %v81 = vld [vmem:[%s1 + $0x1b8] sm:$0xff]
  %v82 = vld [vmem:[%s1 + $0x1c0] sm:$0xff]
  %v83 = vld [vmem:[%s1 + $0x1c8] sm:$0xff]
  %v84 = vld [vmem:[%s1 + $0x1d0] sm:$0xff]
  %v85 = vld [vmem:[%s1 + $0x1d8] sm:$0xff]
  %v86 = vld [vmem:[%s1 + $0x1e0] sm:$0xff]
  %v87 = vld [vmem:[%s1 + $0x1e8] sm:$0xff]
  %v88 = vld [vmem:[%s1 + $0x1f0] sm:$0xff]
  %v89 = vld [vmem:[%s1 + $0x1f8] sm:$0xff]
  %v90 = vld [vmem:[%s1 + $0x200] sm:$0xff]
  %v91 = vld [vmem:[%s1 + $0x208] sm:$0xff]
  %v92 = vld [vmem:[%s1 + $0x210] sm:$0xff]
  %v93 = vld [vmem:[%s1 + $0x218] sm:$0xff]
  %v94 = vld [vmem:[%s1 + $0x220] sm:$0xff]
  %v95 = vld [vmem:[%s1 + $0x228] sm:$0xff]
  %v96 = vld [vmem:[%s1 + $0x230] sm:$0xff]
  %v97 = vld [vmem:[%s1 + $0x238] sm:$0xff]
  %v98 = vld [vmem:[%s1 + $0x240] sm:$0xff]
  %v99 = vld [vmem:[%s1 + $0x248] sm:$0xff]
  %v100 = vld [vmem:[%s1 + $0x250] sm:$0xff]
  %v101 = vld [vmem:[%s1 + $0x258] sm:$0xff]
  %v102 = vld [vmem:[%s1 + $0x260] sm:$0xff]
  %v103 = vld [vmem:[%s1 + $0x268] sm:$0xff]
  %v104 = vld [vmem:[%s1 + $0x270] sm:$0xff]
  %v105 = vld [vmem:[%s1 + $0x278] sm:$0xff]
  %v106 = vld [vmem:[%s1 + $0x280] sm:$0xff]
  %v107 = vld [vmem:[%s1 + $0x288] sm:$0xff]
  %v108 = vld [vmem:[%s1 + $0x290] sm:$0xff]
  %v109 = vld [vmem:[%s1 + $0x298] sm:$0xff]
  %v110 = vld [vmem:[%s1 + $0x2a0] sm:$0xff]
  %v111 = vld [vmem:[%s1 + $0x2a8] sm:$0xff]
  %v112 = vld [vmem:[%s1 + $0x2b0] sm:$0xff]
  %v113 = vld [vmem:[%s1 + $0x2b8] sm:$0xff]
  %v114 = vld [vmem:[%s1 + $0x2c0] sm:$0xff]
  %v115 = vld [vmem:[%s1 + $0x2c8] sm:$0xff]
  %v116 = vld [vmem:[%s1 + $0x2d0] sm:$0xff]
  %v117 = vld [vmem:[%s1 + $0x2d8] sm:$0xff]
  %v118 = vld [vmem:[%s1 + $0x2e0] sm:$0xff]
  %v119 = vld [vmem:[%s1 + $0x2e8] sm:$0xff]
  %v120 = vld [vmem:[%s1 + $0x2f0] sm:$0xff]
  %v121 = vld [vmem:[%s1 + $0x2f8] sm:$0xff]
  %v122 = vld [vmem:[%s1 + $0x300] sm:$0xff]
  %v123 = vld [vmem:[%s1 + $0x308] sm:$0xff]
  %v124 = vld [vmem:[%s1 + $0x310] sm:$0xff]
  %v125 = vld [vmem:[%s1 + $0x318] sm:$0xff]
  %v126 = vld [vmem:[%s1 + $0x320] sm:$0xff]
  %v127 = vld [vmem:[%s1 + $0x328] sm:$0xff]
  %v128 = vld [vmem:[%s1 + $0x330] sm:$0xff]
  %v129 = vld [vmem:[%s1 + $0x338] sm:$0xff]
  %v130 = vld [vmem:[%s1 + $0x340] sm:$0xff]
  %v131 = vld [vmem:[%s1 + $0x348] sm:$0xff]
  %v132 = vld [vmem:[%s1 + $0x350] sm:$0xff]
  %v133 = vld [vmem:[%s1 + $0x358] sm:$0xff]
  %v134 = vld [vmem:[%s1 + $0x360] sm:$0xff]
  %v135 = vld [vmem:[%s1 + $0x368] sm:$0xff]
  %v136 = vld [vmem:[%s1 + $0x370] sm:$0xff]
  %v137 = vld [vmem:[%s1 + $0x378] sm:$0xff]
  %v138 = vld [vmem:[%s1 + $0x380] sm:$0xff]
  %v139 = vld [vmem:[%s1 + $0x388] sm:$0xff]
  %v140 = vld [vmem:[%s1 + $0x390] sm:$0xff]
  %v141 = vld [vmem:[%s1 + $0x398] sm:$0xff]
  %v142 = vld [vmem:[%s1 + $0x3a0] sm:$0xff]
  %v143 = vld [vmem:[%s1 + $0x3a8] sm:$0xff]
  %v144 = vld [vmem:[%s1 + $0x3b0] sm:$0xff]
  %v145 = vld [vmem:[%s1 + $0x3b8] sm:$0xff]
  %v146 = vld [vmem:[%s1 + $0x3c0] sm:$0xff]
  %v147 = vld [vmem:[%s1 + $0x3c8] sm:$0xff]
  %v148 = vld [vmem:[%s1 + $0x3d0] sm:$0xff]
  %v149 = vld [vmem:[%s1 + $0x3d8] sm:$0xff]
  %v150 = vld [vmem:[%s1 + $0x3e0] sm:$0xff]
  %v151 = vld [vmem:[%s1 + $0x3e8] sm:$0xff]
  %v152 = vld [vmem:[%s1 + $0x3f0] sm:$0xff]
  %v153 = vld [vmem:[%s1 + $0x3f8] sm:$0xff]
  %154 = vmatprep.subr.mxu0 0.0
  %155 = vmatpush1.msra.mxu0 %v41
  %156 = vmatprep.subr.mxu0 0.0
  %157 = vmatpush1.msra.mxu0 %v40
  %158 = vmatprep.subr.mxu0 0.0
  %159 = vmatpush1.msra.mxu0 %v39
  %160 = vmatprep.subr.mxu0 0.0
  %161 = vmatpush1.msra.mxu0 %v38
  %162 = vmatprep.subr.mxu0 0.0
  %163 = vmatpush1.msra.mxu0 %v37
  %164 = vmatprep.subr.mxu0 0.0
  %165 = vmatpush1.msra.mxu0 %v36
  %166 = vmatprep.subr.mxu0 0.0
  %167 = vmatpush1.msra.mxu0 %v35
  %168 = vmatprep.subr.mxu0 0.0
  %169 = vmatpush1.msra.mxu0 %v34
  %170 = vmatprep.subr.mxu0 0.0
  %171 = vmatpush1.msra.mxu0 %v33
  %172 = vmatprep.subr.mxu0 0.0
  %173 = vmatpush1.msra.mxu0 %v32
  %174 = vmatprep.subr.mxu0 0.0
  %175 = vmatpush1.msra.mxu0 %v31
  %176 = vmatprep.subr.mxu0 0.0
  %177 = vmatpush1.msra.mxu0 %v30
  %178 = vmatprep.subr.mxu0 0.0
  %179 = vmatpush1.msra.mxu0 %v29
  %180 = vmatprep.subr.mxu0 0.0
  %181 = vmatpush1.msra.mxu0 %v28
  %182 = vmatprep.subr.mxu0 0.0
  %183 = vmatpush1.msra.mxu0 %v27
  %184 = vmatprep.subr.mxu0 0.0
  %185 = vmatpush1.msra.mxu0 %v26
  %186 = vmatprep.subr.mxu0 0.0
  %187 = vmatpush2.msra.mxu0 %v57
  %188 = vmatprep.subr.mxu0 0.0
  %189 = vmatpush2.msra.mxu0 %v56
  %190 = vmatprep.subr.mxu0 0.0
  %191 = vmatpush2.msra.mxu0 %v55
  %192 = vmatprep.subr.mxu0 0.0
  %193 = vmatpush2.msra.mxu0 %v54
  %194 = vmatprep.subr.mxu0 0.0
  %195 = vmatpush2.msra.mxu0 %v53
  %196 = vmatprep.subr.mxu0 0.0
  %197 = vmatpush2.msra.mxu0 %v52
  %198 = vmatprep.subr.mxu0 0.0
  %199 = vmatpush2.msra.mxu0 %v51
  %200 = vmatprep.subr.mxu0 0.0
  %201 = vmatpush2.msra.mxu0 %v50
  %202 = vmatprep.subr.mxu0 0.0
  %203 = vmatpush2.msra.mxu0 %v49
  %204 = vmatprep.subr.mxu0 0.0
  %205 = vmatpush2.msra.mxu0 %v48
  %206 = vmatprep.subr.mxu0 0.0
  %207 = vmatpush2.msra.mxu0 %v47
  %208 = vmatprep.subr.mxu0 0.0
  %209 = vmatpush2.msra.mxu0 %v46
  %210 = vmatprep.subr.mxu0 0.0
  %211 = vmatpush2.msra.mxu0 %v45
  %212 = vmatprep.subr.mxu0 0.0
  %213 = vmatpush2.msra.mxu0 %v44
  %214 = vmatprep.subr.mxu0 0.0
  %215 = vmatpush2.msra.mxu0 %v43
  %216 = vmatprep.subr.mxu0 0.0
  %217 = vmatpush2.msra.mxu0 %v42
  %218 = vmatprep.mubr.f32.mxu0 %v19
  %219 = vmatmul.mubr.f32.gmra.mxu0 %v18
  %v220 = vpop.f32.mrf.mxu0
  %v221 = vadd.f32 0.0, %v220
  %v222 = vpop.f32.mrf.mxu0
  %223 = vdwg.mxu0
  %224 = vmatprep.subr.mxu0 0.0
  %225 = vmatpush1.msra.mxu0 %v73
  %226 = vmatprep.subr.mxu0 0.0
  %227 = vmatpush1.msra.mxu0 %v72
  %228 = vmatprep.subr.mxu0 0.0
  %229 = vmatpush1.msra.mxu0 %v71
  %230 = vmatprep.subr.mxu0 0.0
  %231 = vmatpush1.msra.mxu0 %v70
  %232 = vmatprep.subr.mxu0 0.0
  %233 = vmatpush1.msra.mxu0 %v69
  %234 = vmatprep.subr.mxu0 0.0
  %235 = vmatpush1.msra.mxu0 %v68
  %236 = vmatprep.subr.mxu0 0.0
  %237 = vmatpush1.msra.mxu0 %v67
  %238 = vmatprep.subr.mxu0 0.0
  %239 = vmatpush1.msra.mxu0 %v66
  %240 = vmatprep.subr.mxu0 0.0
  %241 = vmatpush1.msra.mxu0 %v65
  %242 = vmatprep.subr.mxu0 0.0
  %243 = vmatpush1.msra.mxu0 %v64
  %244 = vmatprep.subr.mxu0 0.0
  %245 = vmatpush1.msra.mxu0 %v63
  %246 = vmatprep.subr.mxu0 0.0
  %247 = vmatpush1.msra.mxu0 %v62
  %248 = vmatprep.subr.mxu0 0.0
  %249 = vmatpush1.msra.mxu0 %v61
  %250 = vmatprep.subr.mxu0 0.0
  %251 = vmatpush1.msra.mxu0 %v60
  %252 = vmatprep.subr.mxu0 0.0
  %253 = vmatpush1.msra.mxu0 %v59
  %254 = vmatprep.subr.mxu0 0.0
  %255 = vmatpush1.msra.mxu0 %v58
  %256 = vmatprep.subr.mxu0 0.0
  %257 = vmatpush2.msra.mxu0 %v89
  %258 = vmatprep.subr.mxu0 0.0
  %259 = vmatpush2.msra.mxu0 %v88
  %260 = vmatprep.subr.mxu0 0.0
  %261 = vmatpush2.msra.mxu0 %v87
  %262 = vmatprep.subr.mxu0 0.0
  %263 = vmatpush2.msra.mxu0 %v86
  %264 = vmatprep.subr.mxu0 0.0
  %265 = vmatpush2.msra.mxu0 %v85
  %266 = vmatprep.subr.mxu0 0.0
  %267 = vmatpush2.msra.mxu0 %v84
  %268 = vmatprep.subr.mxu0 0.0
  %269 = vmatpush2.msra.mxu0 %v83
  %270 = vmatprep.subr.mxu0 0.0
  %271 = vmatpush2.msra.mxu0 %v82
  %272 = vmatprep.subr.mxu0 0.0
  %273 = vmatpush2.msra.mxu0 %v81
  %274 = vmatprep.subr.mxu0 0.0
  %275 = vmatpush2.msra.mxu0 %v80
  %276 = vmatprep.subr.mxu0 0.0
  %277 = vmatpush2.msra.mxu0 %v79
  %278 = vmatprep.subr.mxu0 0.0
  %279 = vmatpush2.msra.mxu0 %v78
  %280 = vmatprep.subr.mxu0 0.0
  %281 = vmatpush2.msra.mxu0 %v77
  %282 = vmatprep.subr.mxu0 0.0
  %283 = vmatpush2.msra.mxu0 %v76
  %284 = vmatprep.subr.mxu0 0.0
  %285 = vmatpush2.msra.mxu0 %v75
  %286 = vmatprep.subr.mxu0 0.0
  %287 = vmatpush2.msra.mxu0 %v74
  %288 = vmatprep.mubr.f32.mxu0 %v21
  %289 = vmatmul.mubr.f32.gmra.mxu0 %v20
  %v290 = vpop.f32.mrf.mxu0
  %v291 = vadd.f32 %v221, %v290
  %v292 = vpop.f32.mrf.mxu0
  %293 = vdwg.mxu0
  %294 = vmatprep.subr.mxu0 0.0
  %295 = vmatpush1.msra.mxu0 %v105
  %296 = vmatprep.subr.mxu0 0.0
  %297 = vmatpush1.msra.mxu0 %v104
  %298 = vmatprep.subr.mxu0 0.0
  %299 = vmatpush1.msra.mxu0 %v103
  %300 = vmatprep.subr.mxu0 0.0
  %301 = vmatpush1.msra.mxu0 %v102
  %302 = vmatprep.subr.mxu0 0.0
  %303 = vmatpush1.msra.mxu0 %v101
  %304 = vmatprep.subr.mxu0 0.0
  %305 = vmatpush1.msra.mxu0 %v100
  %306 = vmatprep.subr.mxu0 0.0
  %307 = vmatpush1.msra.mxu0 %v99
  %308 = vmatprep.subr.mxu0 0.0
  %309 = vmatpush1.msra.mxu0 %v98
  %310 = vmatprep.subr.mxu0 0.0
  %311 = vmatpush1.msra.mxu0 %v97
  %312 = vmatprep.subr.mxu0 0.0
  %313 = vmatpush1.msra.mxu0 %v96
  %314 = vmatprep.subr.mxu0 0.0
  %315 = vmatpush1.msra.mxu0 %v95
  %316 = vmatprep.subr.mxu0 0.0
  %317 = vmatpush1.msra.mxu0 %v94
  %318 = vmatprep.subr.mxu0 0.0
  %319 = vmatpush1.msra.mxu0 %v93
  %320 = vmatprep.subr.mxu0 0.0
  %321 = vmatpush1.msra.mxu0 %v92
  %322 = vmatprep.subr.mxu0 0.0
  %323 = vmatpush1.msra.mxu0 %v91
  %324 = vmatprep.subr.mxu0 0.0
  %325 = vmatpush1.msra.mxu0 %v90
  %326 = vmatprep.subr.mxu0 0.0
  %327 = vmatpush2.msra.mxu0 %v121
  %328 = vmatprep.subr.mxu0 0.0
  %329 = vmatpush2.msra.mxu0 %v120
  %330 = vmatprep.subr.mxu0 0.0
  %331 = vmatpush2.msra.mxu0 %v119
  %332 = vmatprep.subr.mxu0 0.0
  %333 = vmatpush2.msra.mxu0 %v118
  %334 = vmatprep.subr.mxu0 0.0
  %335 = vmatpush2.msra.mxu0 %v117
  %336 = vmatprep.subr.mxu0 0.0
  %337 = vmatpush2.msra.mxu0 %v116
  %338 = vmatprep.subr.mxu0 0.0
  %339 = vmatpush2.msra.mxu0 %v115
  %340 = vmatprep.subr.mxu0 0.0
  %341 = vmatpush2.msra.mxu0 %v114
  %342 = vmatprep.subr.mxu0 0.0
  %343 = vmatpush2.msra.mxu0 %v113
  %344 = vmatprep.subr.mxu0 0.0
  %345 = vmatpush2.msra.mxu0 %v112
  %346 = vmatprep.subr.mxu0 0.0
  %347 = vmatpush2.msra.mxu0 %v111
  %348 = vmatprep.subr.mxu0 0.0
  %349 = vmatpush2.msra.mxu0 %v110
  %350 = vmatprep.subr.mxu0 0.0
  %351 = vmatpush2.msra.mxu0 %v109
  %352 = vmatprep.subr.mxu0 0.0
  %353 = vmatpush2.msra.mxu0 %v108
  %354 = vmatprep.subr.mxu0 0.0
  %355 = vmatpush2.msra.mxu0 %v107
  %356 = vmatprep.subr.mxu0 0.0
  %357 = vmatpush2.msra.mxu0 %v106
  %358 = vmatprep.mubr.f32.mxu0 %v23
  %359 = vmatmul.mubr.f32.gmra.mxu0 %v22
  %v360 = vpop.f32.mrf.mxu0
  %v361 = vadd.f32 %v291, %v360
  %v362 = vpop.f32.mrf.mxu0
  %363 = vdwg.mxu0
  %364 = vmatprep.subr.mxu0 0.0
  %365 = vmatpush1.msra.mxu0 %v137
  %366 = vmatprep.subr.mxu0 0.0
  %367 = vmatpush1.msra.mxu0 %v136
  %368 = vmatprep.subr.mxu0 0.0
  %369 = vmatpush1.msra.mxu0 %v135
  %370 = vmatprep.subr.mxu0 0.0
  %371 = vmatpush1.msra.mxu0 %v134
  %372 = vmatprep.subr.mxu0 0.0
  %373 = vmatpush1.msra.mxu0 %v133
  %374 = vmatprep.subr.mxu0 0.0
  %375 = vmatpush1.msra.mxu0 %v132
  %376 = vmatprep.subr.mxu0 0.0
  %377 = vmatpush1.msra.mxu0 %v131
  %378 = vmatprep.subr.mxu0 0.0
  %379 = vmatpush1.msra.mxu0 %v130
  %380 = vmatprep.subr.mxu0 0.0
  %381 = vmatpush1.msra.mxu0 %v129
  %382 = vmatprep.subr.mxu0 0.0
  %383 = vmatpush1.msra.mxu0 %v128
  %384 = vmatprep.subr.mxu0 0.0
  %385 = vmatpush1.msra.mxu0 %v127
  %386 = vmatprep.subr.mxu0 0.0
  %387 = vmatpush1.msra.mxu0 %v126
  %388 = vmatprep.subr.mxu0 0.0
  %389 = vmatpush1.msra.mxu0 %v125
  %390 = vmatprep.subr.mxu0 0.0
  %391 = vmatpush1.msra.mxu0 %v124
  %392 = vmatprep.subr.mxu0 0.0
  %393 = vmatpush1.msra.mxu0 %v123
  %394 = vmatprep.subr.mxu0 0.0
  %395 = vmatpush1.msra.mxu0 %v122
  %396 = vmatprep.subr.mxu0 0.0
  %397 = vmatpush2.msra.mxu0 %v153
  %398 = vmatprep.subr.mxu0 0.0
  %399 = vmatpush2.msra.mxu0 %v152
  %400 = vmatprep.subr.mxu0 0.0
  %401 = vmatpush2.msra.mxu0 %v151
  %402 = vmatprep.subr.mxu0 0.0
  %403 = vmatpush2.msra.mxu0 %v150
  %404 = vmatprep.subr.mxu0 0.0
  %405 = vmatpush2.msra.mxu0 %v149
  %406 = vmatprep.subr.mxu0 0.0
  %407 = vmatpush2.msra.mxu0 %v148
  %408 = vmatprep.subr.mxu0 0.0
  %409 = vmatpush2.msra.mxu0 %v147
  %410 = vmatprep.subr.mxu0 0.0
  %411 = vmatpush2.msra.mxu0 %v146
  %412 = vmatprep.subr.mxu0 0.0
  %413 = vmatpush2.msra.mxu0 %v145
  %414 = vmatprep.subr.mxu0 0.0
  %415 = vmatpush2.msra.mxu0 %v144
  %416 = vmatprep.subr.mxu0 0.0
  %417 = vmatpush2.msra.mxu0 %v143
  %418 = vmatprep.subr.mxu0 0.0
  %419 = vmatpush2.msra.mxu0 %v142
  %420 = vmatprep.subr.mxu0 0.0
  %421 = vmatpush2.msra.mxu0 %v141
  %422 = vmatprep.subr.mxu0 0.0
  %423 = vmatpush2.msra.mxu0 %v140
  %424 = vmatprep.subr.mxu0 0.0
  %425 = vmatpush2.msra.mxu0 %v139
  %426 = vmatprep.subr.mxu0 0.0
  %427 = vmatpush2.msra.mxu0 %v138
  %428 = vmatprep.mubr.f32.mxu0 %v25
  %429 = vmatmul.mubr.f32.gmra.mxu0 %v24
  %v430 = vpop.f32.mrf.mxu0
  %v431 = vadd.f32 %v361, %v430
  %v432 = vpop.f32.mrf.mxu0
  %433 = vdwg.mxu0
  %435 = vrot.lane.b32.xlu0 %v431, 32
  %v436 = vpop.permute.xlu0 %435
  %v438 = vmul.f32 %v431, %v436
  %v439 = vadd.f32 %v438, %v436
  %441 = vrot.lane.b32.xlu0 %v439, 32
  %v442 = vpop.permute.xlu0 %441
  %v444 = vmul.f32 %v431, %v442
  %v445 = vadd.f32 %v444, %v442
  %v446 = vld [vmem:[%s2] sm:$0x1]
  %v448 = vlaneseq
  %v449 = vshrl.u32 %v448, 7
  %v450 = vsub.s32 0, %v449
  %v451 = vrot.slane %v446, %v450
  %452 = vrot.lane.b32.xlu0 %v451, 64
  %v453 = vpop.permute.xlu0 %452
  %v455 = vmul.f32 %v445, %v453
  %457 = vrot.lane.b32.xlu0 %v455, 64
  %v458 = vpop.permute.xlu0 %457
  %vm460 = vcmask 261120
  %v461 = vsel %vm460, %v458, 0.0
  %462 = vadd.xlane.f32.xlu0 %v461
  %v463 = vpop.xlane.xlu0 %462
  %s464 = sld [smem:[#allocation2]]
  %v465 = vstv %s464
  %v466 = vadd.f32 %v463, %v465
  %vm467 = vcmask 7168
  %468 = vst.msk [vmem:[%s4] sm:$0xff] %vm467, %v466
  // Predicated region
  $region18: #{tpu_custom_call.1} parent=0 // pred_check
    _
  $region19: #{tpu_custom_call.1} parent=0 // pred_check_branch
    %470 = sbr.rel (0) target = $region21
  $region20: #{tpu_custom_call.1} parent=0 // pred_region
    _
  $region21: #{tpu_custom_call.1} parent=0 // pred_fallthru
    _
  // Predicated region
  $region22: #{tpu_custom_call.1} parent=0 // pred_check
    _
  $region23: #{tpu_custom_call.1} parent=0 // pred_check_branch
    %472 = sbr.rel (0) target = $region25
  $region24: #{tpu_custom_call.1} parent=0 // pred_region
    _
  $region25: #{tpu_custom_call.1} parent=0 // pred_fallthru
    _

</llo_original>
